<compile_context>
chip_gen: v6e
topology: v6e:2x2x1
jax: 0.10.0
libtpu: 0.0.40
codegen_flags: <defaults>
</compile_context>

<pallas_src>
import functools

import jax
import jax.numpy as jnp
from jax.experimental import pallas as pl
from jax.experimental.pallas import tpu as pltpu

NUM_USERS = 32
NUM_PAPERS = 48
EMB_DIM = 64
NUM_LAYERS = 3
NUM_EDGES = 40
LANE = 128


# ----------------------------- Pallas kernel ------------------------------- #
def _lightcf_kernel(w_ref, x_ref, out_ref):
    # Single MXU matmul: (U+P, U+P) @ (U+P, D_pad) -> (U+P, D_pad),
    # followed by one unmasked, lane-dense full-slab store.
    out_ref[...] = jnp.dot(w_ref[...], x_ref[...],
                           preferred_element_type=jnp.float32)


# ------------------------------- glue (JAX) -------------------------------- #
def _build_norm_adj(edge_index, n_src, n_dst):
    """Row-normalized dense edge-count matrix A / clamp(deg, 1)."""
    src, dst = edge_index[0], edge_index[1]
    a = jnp.zeros((n_src, n_dst), jnp.float32).at[src, dst].add(1.0)
    deg = jnp.zeros((n_src,), jnp.float32).at[src].add(1.0)
    deg = jnp.maximum(deg, 1.0)
    return a / deg[:, None]


@functools.partial(jax.jit, static_argnames=("num_layers",))
def light_hetero_cf_forward(x_u0, x_p0, er, ew, rr, rw, num_layers=NUM_LAYERS):
    U, D = x_u0.shape
    P, _ = x_p0.shape
    N = U + P
    hi = jax.lax.Precision.HIGHEST

    # Degree normalization + 0.5 relation-average folded into the operators:
    #   M_u = 0.5 * (A_rates/deg + A_wants/deg)   (U, P)
    #   M_p = 0.5 * (A_rev_rates/deg + A_rev_wants/deg)   (P, U)
    m_u = 0.5 * (_build_norm_adj(er, U, P) + _build_norm_adj(ew, U, P))
    m_p = 0.5 * (_build_norm_adj(rr, P, U) + _build_norm_adj(rw, P, U))

    # Per layer:  x_u <- M_u x_p ;  x_p <- M_p x_u = E x_p  with E = M_p @ M_u.
    # Layer-averaged outputs:
    #   u_final = (x_u0 + M_u (I + E + ... + E^{L-1}) x_p0) / (L+1)
    #   p_final = ((I + E + ... + E^{L}) x_p0) / (L+1)
    e = jnp.dot(m_p, m_u, precision=hi)                                    # (P, P)
    s_u = jnp.zeros((P, P), jnp.float32)
    e_pow = jnp.eye(P, dtype=jnp.float32)
    for _ in range(num_layers):            # I + E + ... + E^{L-1}
        s_u = s_u + e_pow
        e_pow = jnp.dot(e_pow, e, precision=hi)
    s_p = s_u + e_pow                      # I + E + ... + E^{L}

    inv = jnp.float32(1.0 / (num_layers + 1))
    w_top = jnp.concatenate(
        [jnp.eye(U, dtype=jnp.float32) * inv,
         jnp.dot(m_u, s_u, precision=hi) * inv], axis=1)                   # (U, N)
    w_bot = jnp.concatenate(
        [jnp.zeros((P, U), jnp.float32), s_p * inv], axis=1)               # (P, N)
    w = jnp.concatenate([w_top, w_bot], axis=0)                            # (N, N)

    # Single concatenated embedding slab, zero-padded to a lane-dense width
    # so the kernel's one store is an unmasked full-vreg store.
    x_cat = jnp.concatenate([x_u0, x_p0], axis=0)                          # (N, D)
    d_pad = -(-D // LANE) * LANE
    if d_pad != D:
        x_cat = jnp.pad(x_cat, ((0, 0), (0, d_pad - D)))

    flops = 2 * N * N * d_pad
    bytes_accessed = 4 * (2 * N * d_pad + N * N)
    cost = pl.CostEstimate(flops=flops, transcendentals=0,
                           bytes_accessed=bytes_accessed)

    vmem_spec = pl.BlockSpec(memory_space=pltpu.MemorySpace.VMEM)
    out = pl.pallas_call(
        _lightcf_kernel,
        out_shape=jax.ShapeDtypeStruct((N, d_pad), jnp.float32),
        in_specs=[vmem_spec, vmem_spec],
        out_specs=vmem_spec,
        cost_estimate=cost,
    )(w, x_cat)

    out = out[:, :D]
    return out[:U], out[U:]


# --------------------------- pure-JAX reference ----------------------------- #
def _propagate_ref(x_src, x_dst, edge_index):
    src, dst = edge_index[0], edge_index[1]
    msgs = x_dst[dst]
    deg = jnp.maximum(
        jnp.zeros((x_src.shape[0],), jnp.float32).at[src].add(1.0), 1.0)[:, None]
    agg = jnp.zeros_like(x_src).at[src].add(msgs)
    return agg / deg


def _forward_ref(x_u, x_p, er, ew, rr, rw, num_layers=NUM_LAYERS):
    all_u, all_p = [x_u], [x_p]
    for _ in range(num_layers):
        ru = _propagate_ref(x_u, x_p, er)
        wu = _propagate_ref(x_u, x_p, ew)
        x_u = 0.5 * (ru + wu)
        rp = _propagate_ref(x_p, x_u, rr)
        wp = _propagate_ref(x_p, x_u, rw)
        x_p = 0.5 * (rp + wp)
        all_u.append(x_u)
        all_p.append(x_p)
    return (jnp.stack(all_u, 0).mean(0), jnp.stack(all_p, 0).mean(0))


# ---------------------------------- main ------------------------------------ #
if __name__ == "__main__":
    key = jax.random.PRNGKey(0)
    k_u, k_p, k_e1s, k_e1d, k_e2s, k_e2d = jax.random.split(key, 6)

    # Deterministic "embedding" parameters (nn.Embedding weights).
    x_u0 = jax.random.normal(k_u, (NUM_USERS, EMB_DIM), jnp.float32)
    x_p0 = jax.random.normal(k_p, (NUM_PAPERS, EMB_DIM), jnp.float32)

    # Deterministic synthetic edge lists (2, E): row0 = src, row1 = dst.
    er = jnp.stack([
        jax.random.randint(k_e1s, (NUM_EDGES,), 0, NUM_USERS, jnp.int32),
        jax.random.randint(k_e1d, (NUM_EDGES,), 0, NUM_PAPERS, jnp.int32),
    ])
    ew = jnp.stack([
        jax.random.randint(k_e2s, (NUM_EDGES,), 0, NUM_USERS, jnp.int32),
        jax.random.randint(k_e2d, (NUM_EDGES,), 0, NUM_PAPERS, jnp.int32),
    ])
    rr = er[::-1]  # paper -> user reverse of 'rates'
    rw = ew[::-1]  # paper -> user reverse of 'wants'

    u_final, p_final = light_hetero_cf_forward(x_u0, x_p0, er, ew, rr, rw)
    jax.block_until_ready((u_final, p_final))

    u_ref, p_ref = _forward_ref(x_u0, x_p0, er, ew, rr, rw)
    assert jnp.allclose(u_final, u_ref, atol=1e-4, rtol=1e-4)
    assert jnp.allclose(p_final, p_ref, atol=1e-4, rtol=1e-4)

    print("KERNEL_OK")
</pallas_src>

<mosaic_0001>
module attributes {stable_mosaic.version = 11 : i64} {
  func.func private @main(%arg0: i32) attributes {dimension_semantics = [#tpu.dimension_semantics<core_parallel>], iteration_bounds = array<i64: 2>, tpu.core_type = #tpu.core_type<sc_scalar_subcore>, window_params = []} {
    return
  }
}

module attributes {stable_mosaic.version = 11 : i64} {
  func.func private @main(%arg0: i32) attributes {dimension_semantics = [#tpu.dimension_semantics<core_parallel>], iteration_bounds = array<i64: 2>, tpu.core_type = #tpu.core_type<sc_scalar_subcore>, window_params = []} {
    return
  }
}

module attributes {stable_mosaic.version = 11 : i64} {
  func.func @_lightcf_kernel(%arg0: memref<80x80xf32, #tpu.memory_space<vmem>>, %arg1: memref<80x128xf32, #tpu.memory_space<vmem>>, %arg2: memref<80x128xf32, #tpu.memory_space<vmem>>) attributes {dimension_semantics = [], scalar_prefetch = 0 : i64, scratch_operands = 0 : i64, tpu.core_type = #tpu.core_type<tc>} {
    %c0 = arith.constant 0 : index
    %c0_0 = arith.constant 0 : index
    %0 = vector.load %arg0[%c0, %c0_0] : memref<80x80xf32, #tpu.memory_space<vmem>>, vector<80x80xf32>
    %c0_1 = arith.constant 0 : index
    %c0_2 = arith.constant 0 : index
    %1 = vector.load %arg1[%c0_1, %c0_2] : memref<80x128xf32, #tpu.memory_space<vmem>>, vector<80x128xf32>
    %cst = arith.constant dense<0.000000e+00> : vector<80x128xf32>
    %2 = tpu.matmul %0, %1, %cst {dimension_numbers = #tpu.dot_dimension_numbers<[1], [0], [0], [1], [0, 0, 1, 1], [], []>} : vector<80x80xf32>, vector<80x128xf32>, vector<80x128xf32> -> vector<80x128xf32>
    %c0_3 = arith.constant 0 : index
    %c0_4 = arith.constant 0 : index
    %3 = vector.load %arg2[%c0_3, %c0_4] : memref<80x128xf32, #tpu.memory_space<vmem>>, vector<80x128xf32>
    tpu.vector_store %arg2[%c0_3, %c0_4], %2 {strides = array<i32>} : memref<80x128xf32, #tpu.memory_space<vmem>>, vector<80x128xf32>,
    return
  }
}

</mosaic_0001>

<llo_original>
// kernel: light_hetero_cf_forward.1
$region0: #{light_hetero_cf_forward.1}
  #allocation0 [shape = 'u32[]', space=smem, size = 0x4, offset = 0x4, fixed_abs, tag = 'smem constant byte address 0x4 - core index']
  #allocation1 [shape = 'u32[144,128]{1,0:T(1,128)}', space=vmem, size = 0x12000, scoped, tag = 'internal scratch']
  %s0 = inlined_call_operand.vmem [shape: f32[80,80], index: 0, kind: input, shape index: {}]
  %s1 = inlined_call_operand.vmem [shape: f32[80,128], index: 1, kind: input, shape index: {}]
  %s2 = inlined_call_operand.vmem [shape: f32[80,128], index: 2, kind: output, shape index: {}]
  %s3 = sld [smem:[#allocation0]]
  $region18: #{light_hetero_cf_forward.1} parent=0
    _
  %s5 = ssub.s32 1, %s3
  %s6 = scalar_select 0, %s5, %s3
  // Predicated region
  $region2: #{light_hetero_cf_forward.1} parent=0 // pred_check
    _
  $region3: #{light_hetero_cf_forward.1} parent=0 // pred_check_branch
    %8 = sbr.rel (0) target = $region5
  $region4: #{light_hetero_cf_forward.1} parent=0 // pred_region
    _
  $region5: #{light_hetero_cf_forward.1} parent=0 // pred_fallthru
    _
  // Predicated region
  $region6: #{light_hetero_cf_forward.1} parent=0 // pred_check
    _
  $region7: #{light_hetero_cf_forward.1} parent=0 // pred_check_branch
    %10 = sbr.rel (0) target = $region9
  $region8: #{light_hetero_cf_forward.1} parent=0 // pred_region
    _
  $region9: #{light_hetero_cf_forward.1} parent=0 // pred_fallthru
    _
  %v11 = vld [vmem:[%s0] sm:$0xff]
  %v12 = vld [vmem:[%s0 + $0x8] sm:$0xff]
  %v13 = vld [vmem:[%s0 + $0x10] sm:$0xff]
  %v14 = vld [vmem:[%s0 + $0x18] sm:$0xff]
  %v15 = vld [vmem:[%s0 + $0x20] sm:$0xff]
  %v16 = vld [vmem:[%s0 + $0x28] sm:$0xff]
  %v17 = vld [vmem:[%s0 + $0x30] sm:$0xff]
  %v18 = vld [vmem:[%s0 + $0x38] sm:$0xff]
  %v19 = vld [vmem:[%s0 + $0x40] sm:$0xff]
  %v20 = vld [vmem:[%s0 + $0x48] sm:$0xff]
  %v21 = vld [vmem:[%s1] sm:$0xff]
  %v22 = vld [vmem:[%s1 + $0x8] sm:$0xff]
  %v23 = vld [vmem:[%s1 + $0x10] sm:$0xff]
  %v24 = vld [vmem:[%s1 + $0x18] sm:$0xff]
  %v25 = vld [vmem:[%s1 + $0x20] sm:$0xff]
  %v26 = vld [vmem:[%s1 + $0x28] sm:$0xff]
  %v27 = vld [vmem:[%s1 + $0x30] sm:$0xff]
  %v28 = vld [vmem:[%s1 + $0x38] sm:$0xff]
  %v29 = vld [vmem:[%s1 + $0x40] sm:$0xff]
  %v30 = vld [vmem:[%s1 + $0x48] sm:$0xff]
  %vm31 = vcmask 654336
  %v33 = vsel %vm31, %v11, 0
  %v36 = vsel %vm31, %v12, 0
  %v39 = vsel %vm31, %v13, 0
  %v42 = vsel %vm31, %v14, 0
  %v45 = vsel %vm31, %v15, 0
  %v48 = vsel %vm31, %v16, 0
  %v51 = vsel %vm31, %v17, 0
  %v54 = vsel %vm31, %v18, 0
  %v57 = vsel %vm31, %v19, 0
  %v60 = vsel %vm31, %v20, 0
  %62 = vmatprep.subr.mxu0 0.0
  %63 = vmatpush1.msra.mxu0 0.0
  %64 = vmatprep.subr.mxu0 0.0
  %65 = vmatpush1.msra.mxu0 0.0
  %66 = vmatprep.subr.mxu0 0.0
  %67 = vmatpush1.msra.mxu0 0.0
  %68 = vmatprep.subr.mxu0 0.0
  %69 = vmatpush1.msra.mxu0 0.0
  %70 = vmatprep.subr.mxu0 0.0
  %71 = vmatpush1.msra.mxu0 0.0
  %72 = vmatprep.subr.mxu0 0.0
  %73 = vmatpush1.msra.mxu0 0.0
  %74 = vmatprep.subr.mxu0 0.0
  %75 = vmatpush1.msra.mxu0 %v30
  %76 = vmatprep.subr.mxu0 0.0
  %77 = vmatpush1.msra.mxu0 %v29
  %78 = vmatprep.subr.mxu0 0.0
  %79 = vmatpush1.msra.mxu0 %v28
  %80 = vmatprep.subr.mxu0 0.0
  %81 = vmatpush1.msra.mxu0 %v27
  %82 = vmatprep.subr.mxu0 0.0
  %83 = vmatpush1.msra.mxu0 %v26
  %84 = vmatprep.subr.mxu0 0.0
  %85 = vmatpush1.msra.mxu0 %v25
  %86 = vmatprep.subr.mxu0 0.0
  %87 = vmatpush1.msra.mxu0 %v24
  %88 = vmatprep.subr.mxu0 0.0
  %89 = vmatpush1.msra.mxu0 %v23
  %90 = vmatprep.subr.mxu0 0.0
  %91 = vmatpush1.msra.mxu0 %v22
  %92 = vmatprep.subr.mxu0 0.0
  %93 = vmatpush1.msra.mxu0 %v21
  %94 = vmatprep.subr.mxu0 0.0
  %95 = vmatpush2.msra.mxu0 0.0
  %96 = vmatprep.subr.mxu0 0.0
  %97 = vmatpush2.msra.mxu0 0.0
  %98 = vmatprep.subr.mxu0 0.0
  %99 = vmatpush2.msra.mxu0 0.0
  %100 = vmatprep.subr.mxu0 0.0
  %101 = vmatpush2.msra.mxu0 0.0
  %102 = vmatprep.subr.mxu0 0.0
  %103 = vmatpush2.msra.mxu0 0.0
  %104 = vmatprep.subr.mxu0 0.0
  %105 = vmatpush2.msra.mxu0 0.0
  %106 = vmatprep.subr.mxu0 0.0
  %107 = vmatpush2.msra.mxu0 0.0
  %108 = vmatprep.subr.mxu0 0.0
  %109 = vmatpush2.msra.mxu0 0.0
  %110 = vmatprep.subr.mxu0 0.0
  %111 = vmatpush2.msra.mxu0 0.0
  %112 = vmatprep.subr.mxu0 0.0
  %113 = vmatpush2.msra.mxu0 0.0
  %114 = vmatprep.subr.mxu0 0.0
  %115 = vmatpush2.msra.mxu0 0.0
  %116 = vmatprep.subr.mxu0 0.0
  %117 = vmatpush2.msra.mxu0 0.0
  %118 = vmatprep.subr.mxu0 0.0
  %119 = vmatpush2.msra.mxu0 0.0
  %120 = vmatprep.subr.mxu0 0.0
  %121 = vmatpush2.msra.mxu0 0.0
  %122 = vmatprep.subr.mxu0 0.0
  %123 = vmatpush2.msra.mxu0 0.0
  %124 = vmatprep.subr.mxu0 0.0
  %125 = vmatpush2.msra.mxu0 0.0
  %126 = vmatprep.mubr.f32.mxu0 0.0
  %127 = vmatmul.mubr.f32.gmra.mxu0 %v33
  %v128 = vpop.f32.mrf.mxu0
  %v129 = vadd.f32 0.0, %v128
  %v130 = vpop.f32.mrf.mxu0
  %131 = vmatprep.mubr.f32.mxu0 0.0
  %132 = vmatmul.mubr.f32.gmra.mxu0 %v36
  %v133 = vpop.f32.mrf.mxu0
  %v134 = vadd.f32 0.0, %v133
  %v135 = vpop.f32.mrf.mxu0
  %136 = vmatprep.mubr.f32.mxu0 0.0
  %137 = vmatmul.mubr.f32.gmra.mxu0 %v39
  %v138 = vpop.f32.mrf.mxu0
  %v139 = vadd.f32 0.0, %v138
  %v140 = vpop.f32.mrf.mxu0
  %141 = vmatprep.mubr.f32.mxu0 0.0
  %142 = vmatmul.mubr.f32.gmra.mxu0 %v42
  %v143 = vpop.f32.mrf.mxu0
  %v144 = vadd.f32 0.0, %v143
  %v145 = vpop.f32.mrf.mxu0
  %146 = vmatprep.mubr.f32.mxu0 0.0
  %147 = vmatmul.mubr.f32.gmra.mxu0 %v45
  %v148 = vpop.f32.mrf.mxu0
  %v149 = vadd.f32 0.0, %v148
  %v150 = vpop.f32.mrf.mxu0
  %151 = vmatprep.mubr.f32.mxu0 0.0
  %152 = vmatmul.mubr.f32.gmra.mxu0 %v48
  %v153 = vpop.f32.mrf.mxu0
  %v154 = vadd.f32 0.0, %v153
  %v155 = vpop.f32.mrf.mxu0
  %156 = vmatprep.mubr.f32.mxu0 0.0
  %157 = vmatmul.mubr.f32.gmra.mxu0 %v51
  %v158 = vpop.f32.mrf.mxu0
  %v159 = vadd.f32 0.0, %v158
  %v160 = vpop.f32.mrf.mxu0
  %161 = vmatprep.mubr.f32.mxu0 0.0
  %162 = vmatmul.mubr.f32.gmra.mxu0 %v54
  %v163 = vpop.f32.mrf.mxu0
  %v164 = vadd.f32 0.0, %v163
  %v165 = vpop.f32.mrf.mxu0
  %166 = vmatprep.mubr.f32.mxu0 0.0
  %167 = vmatmul.mubr.f32.gmra.mxu0 %v57
  %v168 = vpop.f32.mrf.mxu0
  %v169 = vadd.f32 0.0, %v168
  %v170 = vpop.f32.mrf.mxu0
  %171 = vmatprep.mubr.f32.mxu0 0.0
  %172 = vmatmul.mubr.f32.gmra.mxu0 %v60
  %v173 = vpop.f32.mrf.mxu0
  %v174 = vadd.f32 0.0, %v173
  %v175 = vpop.f32.mrf.mxu0
  %176 = vdwg.mxu0
  %177 = vst [vmem:[%s2] sm:$0xff] %v129
  %178 = vst [vmem:[%s2 + $0x8] sm:$0xff] %v134
  %179 = vst [vmem:[%s2 + $0x10] sm:$0xff] %v139
  %180 = vst [vmem:[%s2 + $0x18] sm:$0xff] %v144
  %181 = vst [vmem:[%s2 + $0x20] sm:$0xff] %v149
  %182 = vst [vmem:[%s2 + $0x28] sm:$0xff] %v154
  %183 = vst [vmem:[%s2 + $0x30] sm:$0xff] %v159
  %184 = vst [vmem:[%s2 + $0x38] sm:$0xff] %v164
  %185 = vst [vmem:[%s2 + $0x40] sm:$0xff] %v169
  %186 = vst [vmem:[%s2 + $0x48] sm:$0xff] %v174
  // Predicated region
  $region10: #{light_hetero_cf_forward.1} parent=0 // pred_check
    _
  $region11: #{light_hetero_cf_forward.1} parent=0 // pred_check_branch
    %188 = sbr.rel (0) target = $region13
  $region12: #{light_hetero_cf_forward.1} parent=0 // pred_region
    _
  $region13: #{light_hetero_cf_forward.1} parent=0 // pred_fallthru
    _
  // Predicated region
  $region14: #{light_hetero_cf_forward.1} parent=0 // pred_check
    _
  $region15: #{light_hetero_cf_forward.1} parent=0 // pred_check_branch
    %190 = sbr.rel (0) target = $region17
  $region16: #{light_hetero_cf_forward.1} parent=0 // pred_region
    _
  $region17: #{light_hetero_cf_forward.1} parent=0 // pred_fallthru
    _

</llo_original>
